<compile_context>
chip_gen: v7x
topology: tpu7x:2x2x1
jax: 0.10.0
libtpu: 0.0.40
codegen_flags: <defaults>
</compile_context>

<pallas_src>
import functools

import jax
import jax.numpy as jnp
from jax.experimental import pallas as pl
from jax.experimental.pallas import tpu as pltpu

MARGIN = 1.0
EPS = 1e-6          # F.pairwise_distance default eps (added to the difference)
CHUNK_ROWS = 512    # in-kernel compute chunk (bounds f32 temporaries / vreg live ranges)


def _triplet_loss_kernel(a_ref, p_ref, n_ref, out_ref, *, batch, margin, chunk):
    i = pl.program_id(0)
    tm = a_ref.shape[0]

    def rows_partial(start, nrows):
        sl = pl.ds(start, nrows)
        # Upcast after the (possibly narrow-dtype) VMEM load: HBM traffic stays
        # low, all arithmetic in f32 (required on v5e, right numerics everywhere).
        a = a_ref[sl, :].astype(jnp.float32)
        p = p_ref[sl, :].astype(jnp.float32)
        n = n_ref[sl, :].astype(jnp.float32)
        # eps is added per-element to the difference before squaring (PyTorch order).
        dpos = jnp.sqrt(jnp.sum((a - p + EPS) ** 2, axis=-1, keepdims=True))
        dneg = jnp.sqrt(jnp.sum((a - n + EPS) ** 2, axis=-1, keepdims=True))
        loss = jnp.maximum(dpos - dneg + margin, 0.0)                     # (nrows, 1)
        # Mask rows past the true batch size (tail tile when B % tm != 0).
        row = i * tm + start + jax.lax.broadcasted_iota(jnp.int32, (nrows, 1), 0)
        loss = jnp.where(row < batch, loss, 0.0)
        return jnp.sum(loss)

    n_full = tm // chunk
    rem = tm - n_full * chunk

    if n_full == 1 and rem == 0:
        # Small tile: single static chunk, no loop.
        partial = rows_partial(0, tm)
    else:
        def body(c, acc):
            start = pl.multiple_of(c * chunk, chunk)
            return acc + rows_partial(start, chunk)

        partial = jax.lax.fori_loop(0, n_full, body, jnp.float32(0.0),
                                    unroll=(n_full <= 8))
        if rem:
            partial = partial + rows_partial(n_full * chunk, rem)

    # One partial sum per grid step, written as a full (1, 8, 128) block so the
    # store is unmasked and the grid axis stays "parallel" (megacore on v7x).
    out_ref[...] = jnp.broadcast_to(partial, out_ref.shape)


def _vmem_budget():
    """(per-input block byte target, vmem_limit_bytes), generation-aware."""
    try:
        cap = int(pltpu.get_tpu_info().vmem_capacity_bytes)
    except Exception:
        cap = 64 * 1024 * 1024  # conservative (v7x-sized) if detection fails
    if cap >= 100 * 1024 * 1024:          # v5e / v6e: 128 MiB physical VMEM
        return 8 * 1024 * 1024, 96 * 1024 * 1024
    # v7x: 64 MiB per TensorCore -> 3 inputs x 2 buffers x 4 MiB = 24 MiB,
    # plus bounded chunk-sized temporaries, comfortably under a 48 MiB limit.
    return 4 * 1024 * 1024, 48 * 1024 * 1024


def _row_align(dtype):
    itemsize = jnp.dtype(dtype).itemsize
    return 8 * max(1, 4 // itemsize)      # 8 for f32, 16 for bf16, 32 for 8-bit


def _choose_tile_rows(batch, dim, dtype, block_bytes_target):
    itemsize = jnp.dtype(dtype).itemsize
    align = _row_align(dtype)
    target = max(align, block_bytes_target // max(1, dim * itemsize))
    if target >= CHUNK_ROWS:
        # Snap to a multiple of the compute chunk so the in-kernel loop has no tail.
        target = (target // CHUNK_ROWS) * CHUNK_ROWS
    else:
        target = max(align, (target // align) * align)
    if batch > target:
        return target
    # Whole batch fits one tile: split into >= 2 tiles (rounded to the sublane
    # alignment) so both v7x TensorCores can share the "parallel" batch axis.
    half = -(-batch // 2)
    half = -(-half // align) * align
    if half < batch:
        return half
    return batch  # cannot split below alignment; single full-extent tile


def triplet_loss(anchor, positive, negative, *, margin=MARGIN, tile_rows=None,
                 interpret=False):
    B, D = anchor.shape
    assert positive.shape == (B, D) and negative.shape == (B, D)

    block_bytes, vmem_limit = _vmem_budget()
    align = _row_align(anchor.dtype)

    if tile_rows is None:
        tm = _choose_tile_rows(B, D, anchor.dtype, block_bytes)
    else:
        tm = min(int(tile_rows), B)
        if tm < B:
            # Round up to the dtype sublane packing so the BlockSpec keeps the
            # fast unmasked (8,128)-aligned path.
            tm = -(-tm // align) * align
            if tm >= B:
                tm = B

    num_tiles = pl.cdiv(B, tm)
    chunk = tm if tm <= CHUNK_ROWS else CHUNK_ROWS
    itemsize = jnp.dtype(anchor.dtype).itemsize

    kernel = functools.partial(
        _triplet_loss_kernel, batch=B, margin=float(margin), chunk=chunk)

    partials = pl.pallas_call(
        kernel,
        out_shape=jax.ShapeDtypeStruct((num_tiles, 8, 128), jnp.float32),
        grid=(num_tiles,),
        in_specs=[
            pl.BlockSpec((tm, D), lambda i: (i, 0)),
            pl.BlockSpec((tm, D), lambda i: (i, 0)),
            pl.BlockSpec((tm, D), lambda i: (i, 0)),
        ],
        out_specs=pl.BlockSpec((1, 8, 128), lambda i: (i, 0, 0)),
        compiler_params=pltpu.CompilerParams(
            dimension_semantics=("parallel",),
            vmem_limit_bytes=vmem_limit,
        ),
        cost_estimate=pl.CostEstimate(
            flops=8 * B * D,
            transcendentals=2 * B,
            bytes_accessed=3 * B * D * itemsize + num_tiles * 8 * 128 * 4,
        ),
        interpret=interpret,
    )(anchor, positive, negative)

    # Tiny final reduction in the wrapper; divide by the *global* batch size.
    return jnp.sum(partials[:, 0, 0]) / jnp.float32(B)


def triplet_loss_ref(anchor, positive, negative, margin=MARGIN):
    # Pure-JAX reference mirroring PyTorch semantics.
    a = anchor.astype(jnp.float32)
    p = positive.astype(jnp.float32)
    n = negative.astype(jnp.float32)
    dpos = jnp.sqrt(jnp.sum((a - p + EPS) ** 2, axis=-1))
    dneg = jnp.sqrt(jnp.sum((a - n + EPS) ** 2, axis=-1))
    return jnp.mean(jnp.maximum(dpos - dneg + margin, 0.0))


if __name__ == "__main__":
    key = jax.random.PRNGKey(0)
    keys = jax.random.split(key, 9)

    # Case 1: small batch of 128-dim face embeddings (single tile,
    # possibly split in two for the v7x 2-TC path).
    B, D = 8, 128
    anchor = jax.random.normal(keys[0], (B, D), dtype=jnp.float32)
    positive = jax.random.normal(keys[1], (B, D), dtype=jnp.float32)
    negative = jax.random.normal(keys[2], (B, D), dtype=jnp.float32)
    out = jax.block_until_ready(triplet_loss(anchor, positive, negative))
    ref = triplet_loss_ref(anchor, positive, negative)
    assert jnp.allclose(out, ref, rtol=1e-5, atol=1e-5), (out, ref)

    # Case 2: user-supplied tile + ragged tail (B not a multiple of the tile)
    # to exercise the grid pipelining and the tail-row masking.
    B2 = 20
    anchor2 = jax.random.normal(keys[3], (B2, D), dtype=jnp.float32)
    positive2 = jax.random.normal(keys[4], (B2, D), dtype=jnp.float32)
    negative2 = jax.random.normal(keys[5], (B2, D), dtype=jnp.float32)
    out2 = jax.block_until_ready(
        triplet_loss(anchor2, positive2, negative2, tile_rows=8))
    ref2 = triplet_loss_ref(anchor2, positive2, negative2)
    assert jnp.allclose(out2, ref2, rtol=1e-5, atol=1e-5), (out2, ref2)

    # Case 3: moderate batch that exercises the 2-tile split plus the in-kernel
    # chunked loop (tile > CHUNK_ROWS) and its static remainder chunk.
    B3 = 1100
    anchor3 = jax.random.normal(keys[6], (B3, D), dtype=jnp.float32)
    positive3 = jax.random.normal(keys[7], (B3, D), dtype=jnp.float32)
    negative3 = jax.random.normal(keys[8], (B3, D), dtype=jnp.float32)
    out3 = jax.block_until_ready(triplet_loss(anchor3, positive3, negative3))
    ref3 = triplet_loss_ref(anchor3, positive3, negative3)
    assert jnp.allclose(out3, ref3, rtol=1e-5, atol=1e-5), (out3, ref3)

    print("KERNEL_OK")
</pallas_src>

<mosaic_0001>
module attributes {stable_mosaic.version = 11 : i64} {
  func.func @_triplet_loss_kernel(%arg0: i32, %arg1: memref<8x128xf32, #tpu.memory_space<vmem>>, %arg2: memref<8x128xf32, #tpu.memory_space<vmem>>, %arg3: memref<8x128xf32, #tpu.memory_space<vmem>>, %arg4: memref<1x8x128xf32, #tpu.memory_space<vmem>>) attributes {dimension_semantics = [#tpu.dimension_semantics<parallel>], iteration_bounds = array<i64: 1>, scalar_prefetch = 0 : i64, scratch_operands = 0 : i64, tpu.core_type = #tpu.core_type<tc>, window_params = [{transform_indices = @transform_0, window_bounds = array<i64: 8, 128>}, {transform_indices = @transform_1, window_bounds = array<i64: 8, 128>}, {transform_indices = @transform_2, window_bounds = array<i64: 8, 128>}, {transform_indices = @transform_3, window_bounds = array<i64: 1, 8, 128>}]} {
    %c0 = arith.constant 0 : index
    %c0_0 = arith.constant 0 : index
    %0 = vector.load %arg1[%c0, %c0_0] : memref<8x128xf32, #tpu.memory_space<vmem>>, vector<8x128xf32>
    %c0_1 = arith.constant 0 : index
    %c0_2 = arith.constant 0 : index
    %1 = vector.load %arg2[%c0_1, %c0_2] : memref<8x128xf32, #tpu.memory_space<vmem>>, vector<8x128xf32>
    %c0_3 = arith.constant 0 : index
    %c0_4 = arith.constant 0 : index
    %2 = vector.load %arg3[%c0_3, %c0_4] : memref<8x128xf32, #tpu.memory_space<vmem>>, vector<8x128xf32>
    %3 = arith.subf %0, %1 : vector<8x128xf32>
    %cst = arith.constant 9.99999997E-7 : f32
    %4 = vector.broadcast %cst : f32 to vector<8x128xf32>
    %5 = arith.addf %3, %4 : vector<8x128xf32>
    %6 = arith.mulf %5, %5 : vector<8x128xf32>
    %cst_5 = arith.constant dense<0.000000e+00> : vector<8xf32>
    %7 = vector.multi_reduction <add>, %6, %cst_5 [1] : vector<8x128xf32> to vector<8xf32>
    %8 = vector.shape_cast %7 : vector<8xf32> to vector<8x1xf32>
    %9 = math.sqrt %8 : vector<8x1xf32>
    %10 = arith.subf %0, %2 : vector<8x128xf32>
    %cst_6 = arith.constant 9.99999997E-7 : f32
    %11 = vector.broadcast %cst_6 : f32 to vector<8x128xf32>
    %12 = arith.addf %10, %11 : vector<8x128xf32>
    %13 = arith.mulf %12, %12 : vector<8x128xf32>
    %cst_7 = arith.constant dense<0.000000e+00> : vector<8xf32>
    %14 = vector.multi_reduction <add>, %13, %cst_7 [1] : vector<8x128xf32> to vector<8xf32>
    %15 = vector.shape_cast %14 : vector<8xf32> to vector<8x1xf32>
    %16 = math.sqrt %15 : vector<8x1xf32>
    %17 = arith.subf %9, %16 : vector<8x1xf32>
    %cst_8 = arith.constant 1.000000e+00 : f32
    %18 = vector.broadcast %cst_8 : f32 to vector<8x1xf32>
    %19 = arith.addf %17, %18 : vector<8x1xf32>
    %cst_9 = arith.constant 0.000000e+00 : f32
    %20 = vector.broadcast %cst_9 : f32 to vector<8x1xf32>
    %21 = arith.maximumf %19, %20 : vector<8x1xf32>
    %c8_i32 = arith.constant 8 : i32
    %22 = arith.muli %arg0, %c8_i32 : i32
    %c0_i32 = arith.constant 0 : i32
    %23 = arith.addi %22, %c0_i32 : i32
    %24 = tpu.iota {dimensions = array<i32: 0>} : vector<8x1xi32>
    %25 = vector.broadcast %23 : i32 to vector<8x1xi32>
    %26 = arith.addi %25, %24 : vector<8x1xi32>
    %c8_i32_10 = arith.constant 8 : i32
    %27 = vector.broadcast %c8_i32_10 : i32 to vector<8x1xi32>
    %28 = arith.cmpi slt, %26, %27 : vector<8x1xi32>
    %cst_11 = arith.constant 0.000000e+00 : f32
    %29 = vector.broadcast %cst_11 : f32 to vector<8x1xf32>
    %30 = arith.select %28, %21, %29 : vector<8x1xi1>, vector<8x1xf32>
    %31 = vector.shape_cast %30 : vector<8x1xf32> to vector<1x8x1xf32>
    %cst_12 = arith.constant dense<0.000000e+00> : vector<1xf32>
    %32 = vector.multi_reduction <add>, %31, %cst_12 [1, 2] : vector<1x8x1xf32> to vector<1xf32>
    %33 = vector.shape_cast %32 : vector<1xf32> to vector<1x1x1xf32>
    %34 = vector.extract %33[0, 0, 0] : f32 from vector<1x1x1xf32>
    %35 = vector.broadcast %34 : f32 to vector<1x8x128xf32>
    %c0_13 = arith.constant 0 : index
    %c0_14 = arith.constant 0 : index
    %c0_15 = arith.constant 0 : index
    %36 = vector.load %arg4[%c0_13, %c0_14, %c0_15] : memref<1x8x128xf32, #tpu.memory_space<vmem>>, vector<1x8x128xf32>
    tpu.vector_store %arg4[%c0_13, %c0_14, %c0_15], %35 {strides = array<i32>} : memref<1x8x128xf32, #tpu.memory_space<vmem>>, vector<1x8x128xf32>,
    return
  }
  func.func @transform_0(%arg0: i32) -> (i32, i32) {
    %c0_i32 = arith.constant 0 : i32
    %c0_i32_0 = arith.constant 0 : i32
    return %arg0, %c0_i32 : i32, i32
  }
  func.func @transform_1(%arg0: i32) -> (i32, i32) {
    %c0_i32 = arith.constant 0 : i32
    %c0_i32_0 = arith.constant 0 : i32
    return %arg0, %c0_i32 : i32, i32
  }
  func.func @transform_2(%arg0: i32) -> (i32, i32) {
    %c0_i32 = arith.constant 0 : i32
    %c0_i32_0 = arith.constant 0 : i32
    return %arg0, %c0_i32 : i32, i32
  }
  func.func @transform_3(%arg0: i32) -> (i32, i32, i32) {
    %c0_i32 = arith.constant 0 : i32
    %c0_i32_0 = arith.constant 0 : i32
    %c0_i32_1 = arith.constant 0 : i32
    return %arg0, %c0_i32, %c0_i32_0 : i32, i32, i32
  }
}

</mosaic_0001>

<llo_original>
// kernel: tpu_custom_call.1
$region0: #{tpu_custom_call.1}
  #allocation0 [shape = 'u32[]', space=smem, size = 0x4, offset = 0x4, fixed_abs, tag = 'smem constant byte address 0x4 - core index']
  #allocation1 [shape = 'u32[144,128]{1,0:T(1,128)}', space=vmem, size = 0x12000, scoped, tag = 'internal scratch']
  %s0 = inlined_call_operand.hbm [shape: f32[8,128], index: 0, kind: input, shape index: {}]
  %s1 = inlined_call_operand.hbm [shape: f32[8,128], index: 1, kind: input, shape index: {}]
  %s2 = inlined_call_operand.hbm [shape: f32[8,128], index: 2, kind: input, shape index: {}]
  %s3 = inlined_call_operand.hbm [shape: f32[1,8,128], index: 3, kind: output, shape index: {}]
  %s4 = sld [smem:[#allocation0]]
  $region34: #{tpu_custom_call.1} parent=0
    _
  %s6 = ssub.s32 1, %s4
  %s7 = scalar_select 0, %s6, %s4
  $region1: #{tpu_custom_call.1} parent=0
    #allocation2 [shape = 'u8[4096]{0}', space=vmem, size = 0x1000, scoped, tag = 'input window, operand 0, single buffered']
    #allocation3 [shape = 's32[1]{0}', space=sflag, size = 0x4, scoped, tag = 'scoped memory for tpu_custom_call.1']
    #allocation4 [shape = 's32[1]{0}', space=sflag, size = 0x4, scoped, tag = 'scoped memory for tpu_custom_call.1']
    #allocation5 [shape = 'u8[4096]{0}', space=vmem, size = 0x1000, scoped, tag = 'input window, operand 1, single buffered']
    #allocation6 [shape = 's32[1]{0}', space=sflag, size = 0x4, scoped, tag = 'scoped memory for tpu_custom_call.1']
    #allocation7 [shape = 'u8[4096]{0}', space=vmem, size = 0x1000, scoped, tag = 'input window, operand 2, single buffered']
    #allocation8 [shape = 'u8[4096]{0}', space=vmem, size = 0x1000, scoped, tag = 'output window, operand 0, single buffered']
    %8 = vsyncpa [#allocation3], 0
    %9 = vsyncpa [#allocation6], 0
    %10 = vsyncpa [#allocation4], 0
    // Predicated region
    $region2: #{tpu_custom_call.1} parent=1 // pred_check
      _
    $region3: #{tpu_custom_call.1} parent=1 // pred_check_branch
      %12 = sbr.rel (0) target = $region5
    $region4: #{tpu_custom_call.1} parent=1 // pred_region
      %s14 = ssub.s32 128, 128
      %15 = vsyncadd [#allocation3], %s14
      %s17 = sshll.u32 [#allocation2], 4
      %s18 = int_to_ptr.vmem [resolvable:$true] %s17
      %20 = dma.hbm_to_vmem [thread:$0]  %s0, 128, %s18, [#allocation3]
    $region5: #{tpu_custom_call.1} parent=1 // pred_fallthru
      _
    // Predicated region
    $region6: #{tpu_custom_call.1} parent=1 // pred_check
      _
    $region7: #{tpu_custom_call.1} parent=1 // pred_check_branch
      %22 = sbr.rel (0) target = $region9
    $region8: #{tpu_custom_call.1} parent=1 // pred_region
      %s24 = ssub.s32 128, 128
      %25 = vsyncadd [#allocation6], %s24
      %s27 = sshll.u32 [#allocation5], 4
      %s28 = int_to_ptr.vmem [resolvable:$true] %s27
      %30 = dma.hbm_to_vmem [thread:$0]  %s1, 128, %s28, [#allocation6]
    $region9: #{tpu_custom_call.1} parent=1 // pred_fallthru
      _
    // Predicated region
    $region10: #{tpu_custom_call.1} parent=1 // pred_check
      _
    $region11: #{tpu_custom_call.1} parent=1 // pred_check_branch
      %32 = sbr.rel (0) target = $region13
    $region12: #{tpu_custom_call.1} parent=1 // pred_region
      %s34 = ssub.s32 128, 128
      %35 = vsyncadd [#allocation6], %s34
      %s37 = sshll.u32 [#allocation7], 4
      %s38 = int_to_ptr.vmem [resolvable:$true] %s37
      %40 = dma.hbm_to_vmem [thread:$0]  %s2, 128, %s38, [#allocation6]
    $region13: #{tpu_custom_call.1} parent=1 // pred_fallthru
      _
    // Predicated region
    $region14: #{tpu_custom_call.1} parent=1 // pred_check
      _
    $region15: #{tpu_custom_call.1} parent=1 // pred_check_branch
      %42 = sbr.rel (0) target = $region17
    $region16: #{tpu_custom_call.1} parent=1 // pred_region
      %43 = dma.done [#allocation3], 128
    $region17: #{tpu_custom_call.1} parent=1 // pred_fallthru
      _
    // Predicated region
    $region18: #{tpu_custom_call.1} parent=1 // pred_check
      _
    $region19: #{tpu_custom_call.1} parent=1 // pred_check_branch
      %45 = sbr.rel (0) target = $region21
    $region20: #{tpu_custom_call.1} parent=1 // pred_region
      %46 = dma.done [#allocation6], 128
    $region21: #{tpu_custom_call.1} parent=1 // pred_fallthru
      _
    // Predicated region
    $region22: #{tpu_custom_call.1} parent=1 // pred_check
      _
    $region23: #{tpu_custom_call.1} parent=1 // pred_check_branch
      %48 = sbr.rel (0) target = $region25
    $region24: #{tpu_custom_call.1} parent=1 // pred_region
      %49 = dma.done [#allocation6], 128
    $region25: #{tpu_custom_call.1} parent=1 // pred_fallthru
      _
    %v50 = vld [vmem:[#allocation2] sm:$0xff]
    %v51 = vld [vmem:[#allocation5] sm:$0xff]
    %v52 = vld [vmem:[#allocation7] sm:$0xff]
    %v53 = vsub.f32 %v50, %v51
    %v54 = vadd.f32 %v53, 1e-06
    %v55 = vmul.f32 %v54, %v54
    %56 = vadd.xlane.f32.xlu0 %v55
    %v57 = vpop.xlane.xlu0 %56
    %v58 = vrsqrt.pop %v57
    %v59 = vmul.f32 %v57, %v58
    %vm60 = vcmp.eq.f32.partialorder %v57, inf
    %v61 = vsel %vm60, %v57, %v59
    %vm62 = vcmp.eq.f32.partialorder %v57, 0.0
    %v63 = vand.u32 %v57, 2147483648
    %v64 = vsel %vm62, %v63, %v61
    %v65 = vsub.f32 %v50, %v52
    %v66 = vadd.f32 %v65, 1e-06
    %v67 = vmul.f32 %v66, %v66
    %68 = vadd.xlane.f32.xlu0 %v67
    %v69 = vpop.xlane.xlu0 %68
    %v70 = vrsqrt.pop %v69
    %v71 = vmul.f32 %v69, %v70
    %vm72 = vcmp.eq.f32.partialorder %v69, inf
    %v73 = vsel %vm72, %v69, %v71
    %vm74 = vcmp.eq.f32.partialorder %v69, 0.0
    %v75 = vand.u32 %v69, 2147483648
    %v76 = vsel %vm74, %v75, %v73
    %v77 = vsub.f32 %v64, %v76
    %v78 = vadd.f32 %v77, 1.0
    %v79 = vmax.f32 %v78, 0.0
    %s80 = smul.u32 0, 8
    %v81 = vlaneseq
    %v82 = vshrl.u32 %v81, 7
    %v83 = vstv %s80
    %v84 = vadd.s32 %v83, %v82
    %vm85 = vcmp.lt.s32.totalorder %v84, 8
    %v86 = vsel %vm85, %v79, 0.0
    %vm87 = vcmask 7168
    %v88 = vsel %vm87, %v86, 0.0
    %89 = vadd.xlane.f32.xlu0 %v88
    %v90 = vpop.xlane.xlu0 %89
    %v91 = vrot.slane %v90, 4
    %v92 = vadd.f32 %v90, %v91
    %v93 = vrot.slane %v92, 2
    %v94 = vadd.f32 %v92, %v93
    %v95 = vrot.slane %v94, 1
    %v96 = vadd.f32 %v94, %v95
    %s97 = vtos %v96
    %v98 = vstv %s97
    %99 = vst [vmem:[#allocation8] sm:$0xff] %v98
    // Predicated region
    $region26: #{tpu_custom_call.1} parent=1 // pred_check
      _
    $region27: #{tpu_custom_call.1} parent=1 // pred_check_branch
      %101 = sbr.rel (0) target = $region29
    $region28: #{tpu_custom_call.1} parent=1 // pred_region
      %s103 = ssub.s32 128, 128
      %104 = vsyncadd [#allocation4], %s103
      %s106 = sshll.u32 [#allocation8], 4
      %s107 = int_to_ptr.vmem [resolvable:$true] %s106
      %109 = dma.vmem_to_hbm [thread:$0]  %s107, 128, %s3, [#allocation4]
    $region29: #{tpu_custom_call.1} parent=1 // pred_fallthru
      _
    // Predicated region
    $region30: #{tpu_custom_call.1} parent=1 // pred_check
      _
    $region31: #{tpu_custom_call.1} parent=1 // pred_check_branch
      %111 = sbr.rel (0) target = $region33
    $region32: #{tpu_custom_call.1} parent=1 // pred_region
      %112 = dma.done [#allocation4], 128
    $region33: #{tpu_custom_call.1} parent=1 // pred_fallthru
      _
    %113 = vsyncpa [#allocation3], 1
    %114 = vsyncpa [#allocation6], 1
    %115 = vsyncpa [#allocation4], 1

</llo_original>
